<compile_context>
chip_gen: v6e
topology: v6e:2x2x1
jax: 0.10.0
libtpu: 0.0.40
codegen_flags: <defaults>
</compile_context>

<pallas_src>
import functools

import jax
import jax.numpy as jnp
from jax import lax
from jax.experimental import pallas as pl
from jax.experimental.pallas import tpu as pltpu

SMOOTH = 1e-5


def _tile_plan(c, itemsize, max_tile_rows=None):
    """Pick rows-per-tile (multiple of 32) and a VMEM limit, per chip generation.

    Working set per tile row (128 px): logits (double-buffered), int8 labels
    (double-buffered) and ~(C + 6) f32 temporaries (exp slabs, max, denom, ...).
    """
    try:
        phys_vmem = pltpu.get_tpu_info().vmem_capacity_bytes
    except Exception:
        phys_vmem = 0  # unknown -> be conservative (treat like v7x)
    small_vmem = phys_vmem <= (64 << 20)            # v7x: 64 MiB physical
    budget = (10 << 20) if small_vmem else (24 << 20)
    vmem_limit = (40 << 20) if small_vmem else (64 << 20)
    per_row = 128 * (2 * c * itemsize + 2 + 4 * (c + 6))
    ts = max(32, (budget // per_row) // 32 * 32)
    if max_tile_rows is not None:
        ts = max(32, min(ts, (max_tile_rows // 32) * 32))
    return int(ts), int(vmem_limit)


def _fold_rows(x):
    """(TS, 128) -> (8, 128) partial reduction using only elementwise VPU adds."""
    ts, lanes = x.shape
    return jnp.sum(x.reshape(ts // 8, 8, lanes), axis=0)


def gdice_kernel(x_ref, lbl_ref, inter_ref, union_ref, *, npt, hw, needs_mask):
    s = pl.program_id(1)
    t = pl.program_id(2)

    # Output blocks are resident across the reduction axis t: init at t == 0,
    # accumulate directly into them (no scratch, no epilogue copy).
    @pl.when(t == 0)
    def _():
        inter_ref[...] = jnp.zeros_like(inter_ref)
        union_ref[...] = jnp.zeros_like(union_ref)

    c_dim, ts, lanes = x_ref.shape                 # (C, TS, 128)

    # Numerically stable softmax over the small leading channel axis, done as
    # an unrolled loop over C dense (TS, 128) slabs (pure VPU elementwise).
    m = x_ref[0].astype(jnp.float32)
    for c in range(1, c_dim):
        m = jnp.maximum(m, x_ref[c].astype(jnp.float32))

    exps = []
    denom = None
    for c in range(c_dim):
        e = jnp.exp(x_ref[c].astype(jnp.float32) - m)
        exps.append(e)
        denom = e if denom is None else denom + e

    inv = pl.reciprocal(denom, approx=True)        # EUP slot (frees VALU)

    if needs_mask:
        # Padded pixels are zeroed once through the shared reciprocal (a single
        # select for all channels); padded labels are out of range (== C).
        row = lax.broadcasted_iota(jnp.int32, (ts, lanes), 0)
        lane = lax.broadcasted_iota(jnp.int32, (ts, lanes), 1)
        pix = ((s * npt + t) * ts + row) * lanes + lane
        inv = jnp.where(pix < hw, inv, 0.0)

    lbl = lbl_ref[...].astype(jnp.int32)           # (TS, 128)

    for c in range(c_dim):
        p = exps[c] * inv                          # softmax prob of class c
        hit = lbl == c                             # scalar-splat compare
        inter_t = jnp.where(hit, p, 0.0)           # p * onehot
        union_t = jnp.where(hit, p + 1.0, p)       # p + onehot
        inter_ref[c, :, :] = inter_ref[c, :, :] + _fold_rows(inter_t)
        union_ref[c, :, :] = union_ref[c, :, :] + _fold_rows(union_t)


def gdice_loss_v2(net_output, gt_labels, smooth=SMOOTH, *, max_tile_rows=None):
    """net_output: (B, C, H, W) logits (f32 or bf16); gt_labels: (B, H, W) ints."""
    B, C, H, W = net_output.shape
    HW = H * W
    rows = pl.cdiv(HW, 128)

    itemsize = jnp.dtype(net_output.dtype).itemsize
    ts, vmem_limit = _tile_plan(C, itemsize, max_tile_rows)

    # v7x megacore: if the batch axis cannot keep two TensorCores busy, split
    # the spatial reduction over a second parallel axis (harmless on v5e/v6e).
    S = 2 if (B == 1 and rows > ts) else 1
    npt = pl.cdiv(rows, S * ts)
    if S == 1 and npt == 1:
        ts = max(32, pl.cdiv(rows, 32) * 32)       # shrink to one minimal tile
    rows_pad = S * npt * ts
    hw_pad = rows_pad * 128
    needs_mask = hw_pad != HW

    x = net_output.reshape(B, C, HW)
    lbl = gt_labels.reshape(B, HW).astype(jnp.int32)
    if needs_mask:
        x = jnp.pad(x, ((0, 0), (0, 0), (0, hw_pad - HW)))
        lbl = jnp.pad(lbl, ((0, 0), (0, hw_pad - HW)), constant_values=C)
    x = x.reshape(B, C, rows_pad, 128)
    lbl_dtype = jnp.int8 if C < 128 else jnp.int32
    lbl = lbl.astype(lbl_dtype).reshape(B, rows_pad, 128)

    kernel = functools.partial(gdice_kernel, npt=npt, hw=HW,
                               needs_mask=needs_mask)

    cost = pl.CostEstimate(
        flops=int(10 * B * C * hw_pad),
        transcendentals=int(B * C * hw_pad),
        bytes_accessed=int(x.size * itemsize
                           + lbl.size * jnp.dtype(lbl_dtype).itemsize
                           + 2 * B * S * C * 8 * 128 * 4),
    )

    inter, union = pl.pallas_call(
        kernel,
        out_shape=(
            jax.ShapeDtypeStruct((B, S, C, 8, 128), jnp.float32),
            jax.ShapeDtypeStruct((B, S, C, 8, 128), jnp.float32),
        ),
        grid_spec=pltpu.PrefetchScalarGridSpec(
            num_scalar_prefetch=0,
            grid=(B, S, npt),
            in_specs=[
                pl.BlockSpec((None, C, ts, 128),
                             lambda b, s, t: (b, 0, s * npt + t, 0)),
                pl.BlockSpec((None, ts, 128),
                             lambda b, s, t: (b, s * npt + t, 0)),
            ],
            out_specs=(
                pl.BlockSpec((None, None, C, 8, 128),
                             lambda b, s, t: (b, s, 0, 0, 0)),
                pl.BlockSpec((None, None, C, 8, 128),
                             lambda b, s, t: (b, s, 0, 0, 0)),
            ),
        ),
        compiler_params=pltpu.CompilerParams(
            dimension_semantics=("parallel", "parallel", "arbitrary"),
            vmem_limit_bytes=vmem_limit),
        cost_estimate=cost,
    )(x, lbl)

    # Tiny epilogue in plain JAX: fold the split axis, the 8x128 accumulator
    # lanes, then dice / mean / (1 - x).
    inter = jnp.sum(inter, axis=(1, 3, 4))          # (B, C)
    union = jnp.sum(union, axis=(1, 3, 4))          # (B, C)
    dice = 2.0 * inter / (union + smooth)
    return 1.0 - jnp.mean(dice)


def _reference_loss(net_output, labels, smooth=SMOOTH):
    C = net_output.shape[1]
    gt = jnp.transpose(jax.nn.one_hot(labels, C, dtype=jnp.float32),
                       (0, 3, 1, 2))
    p = jax.nn.softmax(net_output, axis=1)
    intersect = jnp.sum(p * gt, axis=(2, 3))
    union = jnp.sum(p, axis=(2, 3)) + jnp.sum(gt, axis=(2, 3))
    dice = 2.0 * intersect / (union + smooth)
    return 1.0 - jnp.mean(dice)


if __name__ == "__main__":
    key = jax.random.PRNGKey(0)
    k1, k2, k3, k4 = jax.random.split(key, 4)

    # Case 1: shapes matching the module docstring (B=2, C=4, 16x16).
    # bf16 logits (halves the HBM stream); labels stored as int8 in HBM.
    B, C, H, W = 2, 4, 16, 16
    logits = jax.random.normal(k1, (B, C, H, W), jnp.float32).astype(jnp.bfloat16)
    labels = jax.random.randint(k2, (B, H, W), 0, C, dtype=jnp.int32)
    loss = jax.block_until_ready(gdice_loss_v2(logits, labels))
    ref = _reference_loss(logits.astype(jnp.float32), labels)
    assert jnp.allclose(loss, ref, atol=3e-3, rtol=3e-3), (loss, ref)

    # Case 2: B=1 exercises the v7x two-TensorCore split of the spatial
    # reduction (multi-tile accumulation + padded-pixel masking).
    B, C, H, W = 1, 3, 112, 112
    logits = jax.random.normal(k3, (B, C, H, W), jnp.float32).astype(jnp.bfloat16)
    labels = jax.random.randint(k4, (B, H, W), 0, C, dtype=jnp.int32)
    loss = jax.block_until_ready(gdice_loss_v2(logits, labels, max_tile_rows=32))
    ref = _reference_loss(logits.astype(jnp.float32), labels)
    assert jnp.allclose(loss, ref, atol=3e-3, rtol=3e-3), (loss, ref)

    print("KERNEL_OK")
</pallas_src>

<mosaic_0001>
module attributes {stable_mosaic.version = 11 : i64} {
  func.func @gdice_kernel(%arg0: i32, %arg1: i32, %arg2: i32, %arg3: memref<1x4x32x128xbf16, #tpu.memory_space<vmem>>, %arg4: memref<1x32x128xi8, #tpu.memory_space<vmem>>, %arg5: memref<1x1x4x8x128xf32, #tpu.memory_space<vmem>>, %arg6: memref<1x1x4x8x128xf32, #tpu.memory_space<vmem>>) attributes {dimension_semantics = [#tpu.dimension_semantics<parallel>, #tpu.dimension_semantics<parallel>, #tpu.dimension_semantics<arbitrary>], iteration_bounds = array<i64: 2, 1, 1>, scalar_prefetch = 0 : i64, scratch_operands = 0 : i64, tpu.core_type = #tpu.core_type<tc>, window_params = [{transform_indices = @transform_0, window_bounds = array<i64: 1, 4, 32, 128>}, {transform_indices = @transform_1, window_bounds = array<i64: 1, 32, 128>}, {transform_indices = @transform_2, window_bounds = array<i64: 1, 1, 4, 8, 128>}, {transform_indices = @transform_3, window_bounds = array<i64: 1, 1, 4, 8, 128>}]} {
    %c0_i32 = arith.constant 0 : i32
    %0 = arith.cmpi eq, %arg2, %c0_i32 : i32
    %1 = arith.extui %0 : i1 to i32
    %c0_i32_0 = arith.constant 0 : i32
    %2 = arith.cmpi ne, %1, %c0_i32_0 : i32
    scf.if %2 {
      %cst_130 = arith.constant 0.000000e+00 : f32
      %155 = vector.broadcast %cst_130 : f32 to vector<4x8x128xf32>
      %c0_131 = arith.constant 0 : index
      %c0_132 = arith.constant 0 : index
      %c0_133 = arith.constant 0 : index
      %c0_134 = arith.constant 0 : index
      %c0_135 = arith.constant 0 : index
      %156 = vector.load %arg5[%c0_131, %c0_132, %c0_133, %c0_134, %c0_135] : memref<1x1x4x8x128xf32, #tpu.memory_space<vmem>>, vector<1x1x4x8x128xf32>
      %157 = vector.shape_cast %156 : vector<1x1x4x8x128xf32> to vector<4x8x128xf32>
      %158 = vector.shape_cast %155 : vector<4x8x128xf32> to vector<1x1x4x8x128xf32>
      tpu.vector_store %arg5[%c0_131, %c0_132, %c0_133, %c0_134, %c0_135], %158 {strides = array<i32>} : memref<1x1x4x8x128xf32, #tpu.memory_space<vmem>>, vector<1x1x4x8x128xf32>,
      %cst_136 = arith.constant 0.000000e+00 : f32
      %159 = vector.broadcast %cst_136 : f32 to vector<4x8x128xf32>
      %c0_137 = arith.constant 0 : index
      %c0_138 = arith.constant 0 : index
      %c0_139 = arith.constant 0 : index
      %c0_140 = arith.constant 0 : index
      %c0_141 = arith.constant 0 : index
      %160 = vector.load %arg6[%c0_137, %c0_138, %c0_139, %c0_140, %c0_141] : memref<1x1x4x8x128xf32, #tpu.memory_space<vmem>>, vector<1x1x4x8x128xf32>
      %161 = vector.shape_cast %160 : vector<1x1x4x8x128xf32> to vector<4x8x128xf32>
      %162 = vector.shape_cast %159 : vector<4x8x128xf32> to vector<1x1x4x8x128xf32>
      tpu.vector_store %arg6[%c0_137, %c0_138, %c0_139, %c0_140, %c0_141], %162 {strides = array<i32>} : memref<1x1x4x8x128xf32, #tpu.memory_space<vmem>>, vector<1x1x4x8x128xf32>,
    } else {
    }
    %c0 = arith.constant 0 : index
    %c0_1 = arith.constant 0 : index
    %c0_2 = arith.constant 0 : index
    %c0_3 = arith.constant 0 : index
    %3 = vector.load %arg3[%c0, %c0_1, %c0_2, %c0_3] : memref<1x4x32x128xbf16, #tpu.memory_space<vmem>>, vector<1x1x32x128xbf16>
    %4 = vector.shape_cast %3 : vector<1x1x32x128xbf16> to vector<32x128xbf16>
    %5 = arith.extf %4 : vector<32x128xbf16> to vector<32x128xf32>
    %c0_4 = arith.constant 0 : index
    %c1 = arith.constant 1 : index
    %c0_5 = arith.constant 0 : index
    %c0_6 = arith.constant 0 : index
    %6 = vector.load %arg3[%c0_4, %c1, %c0_5, %c0_6] : memref<1x4x32x128xbf16, #tpu.memory_space<vmem>>, vector<1x1x32x128xbf16>
    %7 = vector.shape_cast %6 : vector<1x1x32x128xbf16> to vector<32x128xbf16>
    %8 = arith.extf %7 : vector<32x128xbf16> to vector<32x128xf32>
    %9 = arith.maximumf %5, %8 : vector<32x128xf32>
    %c0_7 = arith.constant 0 : index
    %c2 = arith.constant 2 : index
    %c0_8 = arith.constant 0 : index
    %c0_9 = arith.constant 0 : index
    %10 = vector.load %arg3[%c0_7, %c2, %c0_8, %c0_9] : memref<1x4x32x128xbf16, #tpu.memory_space<vmem>>, vector<1x1x32x128xbf16>
    %11 = vector.shape_cast %10 : vector<1x1x32x128xbf16> to vector<32x128xbf16>
    %12 = arith.extf %11 : vector<32x128xbf16> to vector<32x128xf32>
    %13 = arith.maximumf %9, %12 : vector<32x128xf32>
    %c0_10 = arith.constant 0 : index
    %c3 = arith.constant 3 : index
    %c0_11 = arith.constant 0 : index
    %c0_12 = arith.constant 0 : index
    %14 = vector.load %arg3[%c0_10, %c3, %c0_11, %c0_12] : memref<1x4x32x128xbf16, #tpu.memory_space<vmem>>, vector<1x1x32x128xbf16>
    %15 = vector.shape_cast %14 : vector<1x1x32x128xbf16> to vector<32x128xbf16>
    %16 = arith.extf %15 : vector<32x128xbf16> to vector<32x128xf32>
    %17 = arith.maximumf %13, %16 : vector<32x128xf32>
    %c0_13 = arith.constant 0 : index
    %c0_14 = arith.constant 0 : index
    %c0_15 = arith.constant 0 : index
    %c0_16 = arith.constant 0 : index
    %18 = vector.load %arg3[%c0_13, %c0_14, %c0_15, %c0_16] : memref<1x4x32x128xbf16, #tpu.memory_space<vmem>>, vector<1x1x32x128xbf16>
    %19 = vector.shape_cast %18 : vector<1x1x32x128xbf16> to vector<32x128xbf16>
    %20 = arith.extf %19 : vector<32x128xbf16> to vector<32x128xf32>
    %21 = arith.subf %20, %17 : vector<32x128xf32>
    %22 = math.exp %21 : vector<32x128xf32>
    %c0_17 = arith.constant 0 : index
    %c1_18 = arith.constant 1 : index
    %c0_19 = arith.constant 0 : index
    %c0_20 = arith.constant 0 : index
    %23 = vector.load %arg3[%c0_17, %c1_18, %c0_19, %c0_20] : memref<1x4x32x128xbf16, #tpu.memory_space<vmem>>, vector<1x1x32x128xbf16>
    %24 = vector.shape_cast %23 : vector<1x1x32x128xbf16> to vector<32x128xbf16>
    %25 = arith.extf %24 : vector<32x128xbf16> to vector<32x128xf32>
    %26 = arith.subf %25, %17 : vector<32x128xf32>
    %27 = math.exp %26 : vector<32x128xf32>
    %28 = arith.addf %22, %27 : vector<32x128xf32>
    %c0_21 = arith.constant 0 : index
    %c2_22 = arith.constant 2 : index
    %c0_23 = arith.constant 0 : index
    %c0_24 = arith.constant 0 : index
    %29 = vector.load %arg3[%c0_21, %c2_22, %c0_23, %c0_24] : memref<1x4x32x128xbf16, #tpu.memory_space<vmem>>, vector<1x1x32x128xbf16>
    %30 = vector.shape_cast %29 : vector<1x1x32x128xbf16> to vector<32x128xbf16>
    %31 = arith.extf %30 : vector<32x128xbf16> to vector<32x128xf32>
    %32 = arith.subf %31, %17 : vector<32x128xf32>
    %33 = math.exp %32 : vector<32x128xf32>
    %34 = arith.addf %28, %33 : vector<32x128xf32>
    %c0_25 = arith.constant 0 : index
    %c3_26 = arith.constant 3 : index
    %c0_27 = arith.constant 0 : index
    %c0_28 = arith.constant 0 : index
    %35 = vector.load %arg3[%c0_25, %c3_26, %c0_27, %c0_28] : memref<1x4x32x128xbf16, #tpu.memory_space<vmem>>, vector<1x1x32x128xbf16>
    %36 = vector.shape_cast %35 : vector<1x1x32x128xbf16> to vector<32x128xbf16>
    %37 = arith.extf %36 : vector<32x128xbf16> to vector<32x128xf32>
    %38 = arith.subf %37, %17 : vector<32x128xf32>
    %39 = math.exp %38 : vector<32x128xf32>
    %40 = arith.addf %34, %39 : vector<32x128xf32>
    %41 = tpu.reciprocal %40 {approx = true} : vector<32x128xf32> -> vector<32x128xf32>
    %42 = tpu.iota {dimensions = array<i32: 0>} : vector<32x128xi32>
    %43 = tpu.iota {dimensions = array<i32: 1>} : vector<32x128xi32>
    %c1_i32 = arith.constant 1 : i32
    %44 = arith.muli %arg1, %c1_i32 : i32
    %45 = arith.addi %44, %arg2 : i32
    %c32_i32 = arith.constant 32 : i32
    %46 = arith.muli %45, %c32_i32 : i32
    %47 = vector.broadcast %46 : i32 to vector<32x128xi32>
    %48 = arith.addi %47, %42 : vector<32x128xi32>
    %c128_i32 = arith.constant 128 : i32
    %49 = vector.broadcast %c128_i32 : i32 to vector<32x128xi32>
    %50 = arith.muli %48, %49 : vector<32x128xi32>
    %51 = arith.addi %50, %43 : vector<32x128xi32>
    %c256_i32 = arith.constant 256 : i32
    %52 = vector.broadcast %c256_i32 : i32 to vector<32x128xi32>
    %53 = arith.cmpi slt, %51, %52 : vector<32x128xi32>
    %cst = arith.constant 0.000000e+00 : f32
    %54 = vector.broadcast %cst : f32 to vector<32x128xf32>
    %55 = arith.select %53, %41, %54 : vector<32x128xi1>, vector<32x128xf32>
    %c0_29 = arith.constant 0 : index
    %c0_30 = arith.constant 0 : index
    %c0_31 = arith.constant 0 : index
    %56 = vector.load %arg4[%c0_29, %c0_30, %c0_31] : memref<1x32x128xi8, #tpu.memory_space<vmem>>, vector<1x32x128xi8>
    %57 = vector.shape_cast %56 : vector<1x32x128xi8> to vector<32x128xi8>
    %58 = arith.extsi %57 : vector<32x128xi8> to vector<32x128xi32>
    %59 = arith.mulf %22, %55 : vector<32x128xf32>
    %c0_i32_32 = arith.constant 0 : i32
    %60 = vector.broadcast %c0_i32_32 : i32 to vector<32x128xi32>
    %61 = arith.cmpi eq, %58, %60 : vector<32x128xi32>
    %cst_33 = arith.constant 0.000000e+00 : f32
    %62 = vector.broadcast %cst_33 : f32 to vector<32x128xf32>
    %63 = arith.select %61, %59, %62 : vector<32x128xi1>, vector<32x128xf32>
    %cst_34 = arith.constant 1.000000e+00 : f32
    %64 = vector.broadcast %cst_34 : f32 to vector<32x128xf32>
    %65 = arith.addf %59, %64 : vector<32x128xf32>
    %66 = arith.select %61, %65, %59 : vector<32x128xi1>, vector<32x128xf32>
    %c0_35 = arith.constant 0 : index
    %c0_36 = arith.constant 0 : index
    %c0_37 = arith.constant 0 : index
    %c0_38 = arith.constant 0 : index
    %c0_39 = arith.constant 0 : index
    %67 = vector.load %arg5[%c0_35, %c0_36, %c0_37, %c0_38, %c0_39] : memref<1x1x4x8x128xf32, #tpu.memory_space<vmem>>, vector<1x1x1x8x128xf32>
    %68 = vector.shape_cast %67 : vector<1x1x1x8x128xf32> to vector<8x128xf32>
    %69 = vector.shape_cast %63 : vector<32x128xf32> to vector<4x8x128xf32>
    %cst_40 = arith.constant dense<0.000000e+00> : vector<8x128xf32>
    %70 = vector.multi_reduction <add>, %69, %cst_40 [0] : vector<4x8x128xf32> to vector<8x128xf32>
    %71 = arith.addf %68, %70 : vector<8x128xf32>
    %c0_41 = arith.constant 0 : index
    %c0_42 = arith.constant 0 : index
    %c0_43 = arith.constant 0 : index
    %c0_44 = arith.constant 0 : index
    %c0_45 = arith.constant 0 : index
    %72 = vector.load %arg5[%c0_41, %c0_42, %c0_43, %c0_44, %c0_45] : memref<1x1x4x8x128xf32, #tpu.memory_space<vmem>>, vector<1x1x1x8x128xf32>
    %73 = vector.shape_cast %72 : vector<1x1x1x8x128xf32> to vector<8x128xf32>
    %74 = vector.shape_cast %71 : vector<8x128xf32> to vector<1x1x1x8x128xf32>
    tpu.vector_store %arg5[%c0_41, %c0_42, %c0_43, %c0_44, %c0_45], %74 {strides = array<i32>} : memref<1x1x4x8x128xf32, #tpu.memory_space<vmem>>, vector<1x1x1x8x128xf32>,
    %c0_46 = arith.constant 0 : index
    %c0_47 = arith.constant 0 : index
    %c0_48 = arith.constant 0 : index
    %c0_49 = arith.constant 0 : index
    %c0_50 = arith.constant 0 : index
    %75 = vector.load %arg6[%c0_46, %c0_47, %c0_48, %c0_49, %c0_50] : memref<1x1x4x8x128xf32, #tpu.memory_space<vmem>>, vector<1x1x1x8x128xf32>
    %76 = vector.shape_cast %75 : vector<1x1x1x8x128xf32> to vector<8x128xf32>
    %77 = vector.shape_cast %66 : vector<32x128xf32> to vector<4x8x128xf32>
    %cst_51 = arith.constant dense<0.000000e+00> : vector<8x128xf32>
    %78 = vector.multi_reduction <add>, %77, %cst_51 [0] : vector<4x8x128xf32> to vector<8x128xf32>
    %79 = arith.addf %76, %78 : vector<8x128xf32>
    %c0_52 = arith.constant 0 : index
    %c0_53 = arith.constant 0 : index
    %c0_54 = arith.constant 0 : index
    %c0_55 = arith.constant 0 : index
    %c0_56 = arith.constant 0 : index
    %80 = vector.load %arg6[%c0_52, %c0_53, %c0_54, %c0_55, %c0_56] : memref<1x1x4x8x128xf32, #tpu.memory_space<vmem>>, vector<1x1x1x8x128xf32>
    %81 = vector.shape_cast %80 : vector<1x1x1x8x128xf32> to vector<8x128xf32>
    %82 = vector.shape_cast %79 : vector<8x128xf32> to vector<1x1x1x8x128xf32>
    tpu.vector_store %arg6[%c0_52, %c0_53, %c0_54, %c0_55, %c0_56], %82 {strides = array<i32>} : memref<1x1x4x8x128xf32, #tpu.memory_space<vmem>>, vector<1x1x1x8x128xf32>,
    %83 = arith.mulf %27, %55 : vector<32x128xf32>
    %c1_i32_57 = arith.constant 1 : i32
    %84 = vector.broadcast %c1_i32_57 : i32 to vector<32x128xi32>
    %85 = arith.cmpi eq, %58, %84 : vector<32x128xi32>
    %cst_58 = arith.constant 0.000000e+00 : f32
    %86 = vector.broadcast %cst_58 : f32 to vector<32x128xf32>
    %87 = arith.select %85, %83, %86 : vector<32x128xi1>, vector<32x128xf32>
    %cst_59 = arith.constant 1.000000e+00 : f32
    %88 = vector.broadcast %cst_59 : f32 to vector<32x128xf32>
    %89 = arith.addf %83, %88 : vector<32x128xf32>
    %90 = arith.select %85, %89, %83 : vector<32x128xi1>, vector<32x128xf32>
    %c0_60 = arith.constant 0 : index
    %c0_61 = arith.constant 0 : index
    %c1_62 = arith.constant 1 : index
    %c0_63 = arith.constant 0 : index
    %c0_64 = arith.constant 0 : index
    %91 = vector.load %arg5[%c0_60, %c0_61, %c1_62, %c0_63, %c0_64] : memref<1x1x4x8x128xf32, #tpu.memory_space<vmem>>, vector<1x1x1x8x128xf32>
    %92 = vector.shape_cast %91 : vector<1x1x1x8x128xf32> to vector<8x128xf32>
    %93 = vector.shape_cast %87 : vector<32x128xf32> to vector<4x8x128xf32>
    %cst_65 = arith.constant dense<0.000000e+00> : vector<8x128xf32>
    %94 = vector.multi_reduction <add>, %93, %cst_65 [0] : vector<4x8x128xf32> to vector<8x128xf32>
    %95 = arith.addf %92, %94 : vector<8x128xf32>
    %c0_66 = arith.constant 0 : index
    %c0_67 = arith.constant 0 : index
    %c1_68 = arith.constant 1 : index
    %c0_69 = arith.constant 0 : index
    %c0_70 = arith.constant 0 : index
    %96 = vector.load %arg5[%c0_66, %c0_67, %c1_68, %c0_69, %c0_70] : memref<1x1x4x8x128xf32, #tpu.memory_space<vmem>>, vector<1x1x1x8x128xf32>
    %97 = vector.shape_cast %96 : vector<1x1x1x8x128xf32> to vector<8x128xf32>
    %98 = vector.shape_cast %95 : vector<8x128xf32> to vector<1x1x1x8x128xf32>
    tpu.vector_store %arg5[%c0_66, %c0_67, %c1_68, %c0_69, %c0_70], %98 {strides = array<i32>} : memref<1x1x4x8x128xf32, #tpu.memory_space<vmem>>, vector<1x1x1x8x128xf32>,
    %c0_71 = arith.constant 0 : index
    %c0_72 = arith.constant 0 : index
    %c1_73 = arith.constant 1 : index
    %c0_74 = arith.constant 0 : index
    %c0_75 = arith.constant 0 : index
    %99 = vector.load %arg6[%c0_71, %c0_72, %c1_73, %c0_74, %c0_75] : memref<1x1x4x8x128xf32, #tpu.memory_space<vmem>>, vector<1x1x1x8x128xf32>
    %100 = vector.shape_cast %99 : vector<1x1x1x8x128xf32> to vector<8x128xf32>
    %101 = vector.shape_cast %90 : vector<32x128xf32> to vector<4x8x128xf32>
    %cst_76 = arith.constant dense<0.000000e+00> : vector<8x128xf32>
    %102 = vector.multi_reduction <add>, %101, %cst_76 [0] : vector<4x8x128xf32> to vector<8x128xf32>
    %103 = arith.addf %100, %102 : vector<8x128xf32>
    %c0_77 = arith.constant 0 : index
    %c0_78 = arith.constant 0 : index
    %c1_79 = arith.constant 1 : index
    %c0_80 = arith.constant 0 : index
    %c0_81 = arith.constant 0 : index
    %104 = vector.load %arg6[%c0_77, %c0_78, %c1_79, %c0_80, %c0_81] : memref<1x1x4x8x128xf32, #tpu.memory_space<vmem>>, vector<1x1x1x8x128xf32>
    %105 = vector.shape_cast %104 : vector<1x1x1x8x128xf32> to vector<8x128xf32>
    %106 = vector.shape_cast %103 : vector<8x128xf32> to vector<1x1x1x8x128xf32>
    tpu.vector_store %arg6[%c0_77, %c0_78, %c1_79, %c0_80, %c0_81], %106 {strides = array<i32>} : memref<1x1x4x8x128xf32, #tpu.memory_space<vmem>>, vector<1x1x1x8x128xf32>,
    %107 = arith.mulf %33, %55 : vector<32x128xf32>
    %c2_i32 = arith.constant 2 : i32
    %108 = vector.broadcast %c2_i32 : i32 to vector<32x128xi32>
    %109 = arith.cmpi eq, %58, %108 : vector<32x128xi32>
    %cst_82 = arith.constant 0.000000e+00 : f32
    %110 = vector.broadcast %cst_82 : f32 to vector<32x128xf32>
    %111 = arith.select %109, %107, %110 : vector<32x128xi1>, vector<32x128xf32>
    %cst_83 = arith.constant 1.000000e+00 : f32
    %112 = vector.broadcast %cst_83 : f32 to vector<32x128xf32>
    %113 = arith.addf %107, %112 : vector<32x128xf32>
    %114 = arith.select %109, %113, %107 : vector<32x128xi1>, vector<32x128xf32>
    %c0_84 = arith.constant 0 : index
    %c0_85 = arith.constant 0 : index
    %c2_86 = arith.constant 2 : index
    %c0_87 = arith.constant 0 : index
    %c0_88 = arith.constant 0 : index
    %115 = vector.load %arg5[%c0_84, %c0_85, %c2_86, %c0_87, %c0_88] : memref<1x1x4x8x128xf32, #tpu.memory_space<vmem>>, vector<1x1x1x8x128xf32>
    %116 = vector.shape_cast %115 : vector<1x1x1x8x128xf32> to vector<8x128xf32>
    %117 = vector.shape_cast %111 : vector<32x128xf32> to vector<4x8x128xf32>
    %cst_89 = arith.constant dense<0.000000e+00> : vector<8x128xf32>
    %118 = vector.multi_reduction <add>, %117, %cst_89 [0] : vector<4x8x128xf32> to vector<8x128xf32>
    %119 = arith.addf %116, %118 : vector<8x128xf32>
    %c0_90 = arith.constant 0 : index
    %c0_91 = arith.constant 0 : index
    %c2_92 = arith.constant 2 : index
    %c0_93 = arith.constant 0 : index
    %c0_94 = arith.constant 0 : index
    %120 = vector.load %arg5[%c0_90, %c0_91, %c2_92, %c0_93, %c0_94] : memref<1x1x4x8x128xf32, #tpu.memory_space<vmem>>, vector<1x1x1x8x128xf32>
    %121 = vector.shape_cast %120 : vector<1x1x1x8x128xf32> to vector<8x128xf32>
    %122 = vector.shape_cast %119 : vector<8x128xf32> to vector<1x1x1x8x128xf32>
    tpu.vector_store %arg5[%c0_90, %c0_91, %c2_92, %c0_93, %c0_94], %122 {strides = array<i32>} : memref<1x1x4x8x128xf32, #tpu.memory_space<vmem>>, vector<1x1x1x8x128xf32>,
    %c0_95 = arith.constant 0 : index
    %c0_96 = arith.constant 0 : index
    %c2_97 = arith.constant 2 : index
    %c0_98 = arith.constant 0 : index
    %c0_99 = arith.constant 0 : index
    %123 = vector.load %arg6[%c0_95, %c0_96, %c2_97, %c0_98, %c0_99] : memref<1x1x4x8x128xf32, #tpu.memory_space<vmem>>, vector<1x1x1x8x128xf32>
    %124 = vector.shape_cast %123 : vector<1x1x1x8x128xf32> to vector<8x128xf32>
    %125 = vector.shape_cast %114 : vector<32x128xf32> to vector<4x8x128xf32>
    %cst_100 = arith.constant dense<0.000000e+00> : vector<8x128xf32>
    %126 = vector.multi_reduction <add>, %125, %cst_100 [0] : vector<4x8x128xf32> to vector<8x128xf32>
    %127 = arith.addf %124, %126 : vector<8x128xf32>
    %c0_101 = arith.constant 0 : index
    %c0_102 = arith.constant 0 : index
    %c2_103 = arith.constant 2 : index
    %c0_104 = arith.constant 0 : index
    %c0_105 = arith.constant 0 : index
    %128 = vector.load %arg6[%c0_101, %c0_102, %c2_103, %c0_104, %c0_105] : memref<1x1x4x8x128xf32, #tpu.memory_space<vmem>>, vector<1x1x1x8x128xf32>
    %129 = vector.shape_cast %128 : vector<1x1x1x8x128xf32> to vector<8x128xf32>
    %130 = vector.shape_cast %127 : vector<8x128xf32> to vector<1x1x1x8x128xf32>
    tpu.vector_store %arg6[%c0_101, %c0_102, %c2_103, %c0_104, %c0_105], %130 {strides = array<i32>} : memref<1x1x4x8x128xf32, #tpu.memory_space<vmem>>, vector<1x1x1x8x128xf32>,
    %131 = arith.mulf %39, %55 : vector<32x128xf32>
    %c3_i32 = arith.constant 3 : i32
    %132 = vector.broadcast %c3_i32 : i32 to vector<32x128xi32>
    %133 = arith.cmpi eq, %58, %132 : vector<32x128xi32>
    %cst_106 = arith.constant 0.000000e+00 : f32
    %134 = vector.broadcast %cst_106 : f32 to vector<32x128xf32>
    %135 = arith.select %133, %131, %134 : vector<32x128xi1>, vector<32x128xf32>
    %cst_107 = arith.constant 1.000000e+00 : f32
    %136 = vector.broadcast %cst_107 : f32 to vector<32x128xf32>
    %137 = arith.addf %131, %136 : vector<32x128xf32>
    %138 = arith.select %133, %137, %131 : vector<32x128xi1>, vector<32x128xf32>
    %c0_108 = arith.constant 0 : index
    %c0_109 = arith.constant 0 : index
    %c3_110 = arith.constant 3 : index
    %c0_111 = arith.constant 0 : index
    %c0_112 = arith.constant 0 : index
    %139 = vector.load %arg5[%c0_108, %c0_109, %c3_110, %c0_111, %c0_112] : memref<1x1x4x8x128xf32, #tpu.memory_space<vmem>>, vector<1x1x1x8x128xf32>
    %140 = vector.shape_cast %139 : vector<1x1x1x8x128xf32> to vector<8x128xf32>
    %141 = vector.shape_cast %135 : vector<32x128xf32> to vector<4x8x128xf32>
    %cst_113 = arith.constant dense<0.000000e+00> : vector<8x128xf32>
    %142 = vector.multi_reduction <add>, %141, %cst_113 [0] : vector<4x8x128xf32> to vector<8x128xf32>
    %143 = arith.addf %140, %142 : vector<8x128xf32>
    %c0_114 = arith.constant 0 : index
    %c0_115 = arith.constant 0 : index
    %c3_116 = arith.constant 3 : index
    %c0_117 = arith.constant 0 : index
    %c0_118 = arith.constant 0 : index
    %144 = vector.load %arg5[%c0_114, %c0_115, %c3_116, %c0_117, %c0_118] : memref<1x1x4x8x128xf32, #tpu.memory_space<vmem>>, vector<1x1x1x8x128xf32>
    %145 = vector.shape_cast %144 : vector<1x1x1x8x128xf32> to vector<8x128xf32>
    %146 = vector.shape_cast %143 : vector<8x128xf32> to vector<1x1x1x8x128xf32>
    tpu.vector_store %arg5[%c0_114, %c0_115, %c3_116, %c0_117, %c0_118], %146 {strides = array<i32>} : memref<1x1x4x8x128xf32, #tpu.memory_space<vmem>>, vector<1x1x1x8x128xf32>,
    %c0_119 = arith.constant 0 : index
    %c0_120 = arith.constant 0 : index
    %c3_121 = arith.constant 3 : index
    %c0_122 = arith.constant 0 : index
    %c0_123 = arith.constant 0 : index
    %147 = vector.load %arg6[%c0_119, %c0_120, %c3_121, %c0_122, %c0_123] : memref<1x1x4x8x128xf32, #tpu.memory_space<vmem>>, vector<1x1x1x8x128xf32>
    %148 = vector.shape_cast %147 : vector<1x1x1x8x128xf32> to vector<8x128xf32>
    %149 = vector.shape_cast %138 : vector<32x128xf32> to vector<4x8x128xf32>
    %cst_124 = arith.constant dense<0.000000e+00> : vector<8x128xf32>
    %150 = vector.multi_reduction <add>, %149, %cst_124 [0] : vector<4x8x128xf32> to vector<8x128xf32>
    %151 = arith.addf %148, %150 : vector<8x128xf32>
    %c0_125 = arith.constant 0 : index
    %c0_126 = arith.constant 0 : index
    %c3_127 = arith.constant 3 : index
    %c0_128 = arith.constant 0 : index
    %c0_129 = arith.constant 0 : index
    %152 = vector.load %arg6[%c0_125, %c0_126, %c3_127, %c0_128, %c0_129] : memref<1x1x4x8x128xf32, #tpu.memory_space<vmem>>, vector<1x1x1x8x128xf32>
    %153 = vector.shape_cast %152 : vector<1x1x1x8x128xf32> to vector<8x128xf32>
    %154 = vector.shape_cast %151 : vector<8x128xf32> to vector<1x1x1x8x128xf32>
    tpu.vector_store %arg6[%c0_125, %c0_126, %c3_127, %c0_128, %c0_129], %154 {strides = array<i32>} : memref<1x1x4x8x128xf32, #tpu.memory_space<vmem>>, vector<1x1x1x8x128xf32>,
    return
  }
  func.func @transform_0(%arg0: i32, %arg1: i32, %arg2: i32) -> (i32, i32, i32, i32) {
    %c1_i32 = arith.constant 1 : i32
    %0 = arith.muli %arg1, %c1_i32 : i32
    %1 = arith.addi %0, %arg2 : i32
    %c0_i32 = arith.constant 0 : i32
    %c0_i32_0 = arith.constant 0 : i32
    %c0_i32_1 = arith.constant 0 : i32
    return %arg0, %c0_i32, %1, %c0_i32_0 : i32, i32, i32, i32
  }
  func.func @transform_1(%arg0: i32, %arg1: i32, %arg2: i32) -> (i32, i32, i32) {
    %c1_i32 = arith.constant 1 : i32
    %0 = arith.muli %arg1, %c1_i32 : i32
    %1 = arith.addi %0, %arg2 : i32
    %c0_i32 = arith.constant 0 : i32
    %c0_i32_0 = arith.constant 0 : i32
    return %arg0, %1, %c0_i32 : i32, i32, i32
  }
  func.func @transform_2(%arg0: i32, %arg1: i32, %arg2: i32) -> (i32, i32, i32, i32, i32) {
    %c0_i32 = arith.constant 0 : i32
    %c0_i32_0 = arith.constant 0 : i32
    %c0_i32_1 = arith.constant 0 : i32
    %c0_i32_2 = arith.constant 0 : i32
    return %arg0, %arg1, %c0_i32, %c0_i32_0, %c0_i32_1 : i32, i32, i32, i32, i32
  }
  func.func @transform_3(%arg0: i32, %arg1: i32, %arg2: i32) -> (i32, i32, i32, i32, i32) {
    %c0_i32 = arith.constant 0 : i32
    %c0_i32_0 = arith.constant 0 : i32
    %c0_i32_1 = arith.constant 0 : i32
    %c0_i32_2 = arith.constant 0 : i32
    return %arg0, %arg1, %c0_i32, %c0_i32_0, %c0_i32_1 : i32, i32, i32, i32, i32
  }
}

</mosaic_0001>

<llo_original>
// kernel: tpu_custom_call.1
$region0: #{tpu_custom_call.1}
  #allocation0 [shape = 'u32[]', space=smem, size = 0x4, offset = 0x4, fixed_abs, tag = 'smem constant byte address 0x4 - core index']
  #allocation1 [shape = 'u32[144,128]{1,0:T(1,128)}', space=vmem, size = 0x12000, scoped, tag = 'internal scratch']
  %s0 = inlined_call_operand.hbm [shape: bf16[2,4,32,128], index: 0, kind: input, shape index: {}]
  %s1 = inlined_call_operand.hbm [shape: s8[2,32,128], index: 1, kind: input, shape index: {}]
  %s2 = inlined_call_operand.hbm [shape: f32[2,1,4,8,128], index: 2, kind: output, shape index: {0}]
  %s3 = inlined_call_operand.hbm [shape: f32[2,1,4,8,128], index: 3, kind: output, shape index: {1}]
  %4 = xla_tuple %s2, %s3
  %s5 = sld [smem:[#allocation0]]
  $region61: #{tpu_custom_call.1} parent=0
    _
  %s7 = ssub.s32 1, %s5
  %s8 = scalar_select 0, %s7, %s5
  $region1: #{tpu_custom_call.1} parent=0
    #allocation2 [shape = 'u8[65536]{0}', space=vmem, size = 0x10000, scoped, tag = 'input window, operand 0']
    #allocation3 [shape = 's32[2]{0}', space=sflag, size = 0x8, scoped, tag = 'scoped memory for tpu_custom_call.1']
    #allocation4 [shape = 's32[2]{0}', space=sflag, size = 0x8, scoped, tag = 'scoped memory for tpu_custom_call.1']
    #allocation5 [shape = 'u8[8192]{0}', space=vmem, size = 0x2000, scoped, tag = 'input window, operand 1']
    #allocation6 [shape = 's32[2]{0}', space=sflag, size = 0x8, scoped, tag = 'scoped memory for tpu_custom_call.1']
    #allocation7 [shape = 'u8[32768]{0}', space=vmem, size = 0x8000, scoped, tag = 'output window, operand 0']
    #allocation8 [shape = 'u8[32768]{0}', space=vmem, size = 0x8000, scoped, tag = 'output window, operand 1']
    #allocation9 [shape = 's32[2]{0}', space=sflag, size = 0x8, scoped, tag = 'scoped memory for tpu_custom_call.1']
    %9 = vsyncpa [#allocation3], 0
    %s10 = scalar_lea.sflag [#allocation3], 1
    %11 = vsyncpa %s10, 0
    %12 = vsyncpa [#allocation6], 0
    %s13 = scalar_lea.sflag [#allocation6], 1
    %14 = vsyncpa %s13, 0
    %15 = vsyncpa [#allocation4], 0
    %s16 = scalar_lea.sflag [#allocation4], 1
    %17 = vsyncpa %s16, 0
    %18 = vsyncpa [#allocation9], 0
    %s19 = scalar_lea.sflag [#allocation9], 1
    %20 = vsyncpa %s19, 0
    loop: start=0, step=1, limit=4
    $region2: #{tpu_custom_call.1} parent=1 // loop_pre_header
      _
    $region3: #{tpu_custom_call.1} parent=1 // loop_header
      %s22 = sphi 0, %s26
      %p23 = scmp.ge.s32.totalorder %s22, 4
      %s29 = sphi 0, %s48
      %s30 = sphi 0, %s44
      %s31 = sphi 0, %s40
      %s32 = sphi 0, %s29
      %s33 = sphi 0, %s30
      %s34 = sphi 0, %s31
      %s35 = sphi 0, %s32
      %s36 = sphi 0, %s33
      %s37 = sphi 0, %s34
      %s55 = sphi 0, %s57
      %s58 = sphi 0, %s55
      %s59 = sphi 0, %s58
      %s75 = sphi 0, %s59
      %s85 = sphi 0, %s87
      %s88 = sphi 0, %s85
      %s89 = sphi 0, %s88
      %s105 = sphi 0, %s89
      %s113 = sphi 0, %s115
      %s116 = sphi 0, %s113
      %s117 = sphi 0, %s116
      %s133 = sphi 0, %s117
      %s141 = sphi 0, %s143
      %s144 = sphi 0, %s141
      %s145 = sphi 0, %s144
      %s161 = sphi 0, %s145
    $region4: #{tpu_custom_call.1} parent=1 // loop_header_branch
      %25 = sbr.rel (%p23) target = $region8
    $region5: #{tpu_custom_call.1} parent=1 // loop_body
      %s27 = ssub.s32 %s22, 1
      %s28 = ssub.s32 %s22, 2
      %s38 = sadd.s32 1, %s31
      %p39 = scmp.ge.s32.totalorder %s38, 1
      %s40 = scalar_select %p39, 0, %s38
      %s41 = sadd.s32 1, %s30
      %s42 = scalar_select %p39, %s41, %s30
      %p43 = scmp.ge.s32.totalorder %s42, 1
      %s44 = scalar_select %p43, 0, %s42
      %s45 = sadd.s32 1, %s29
      %s46 = scalar_select %p43, %s45, %s29
      %p47 = scmp.ge.s32.totalorder %s46, 2
      %s48 = scalar_select %p47, 0, %s46
      %s49 = sadd.s32 %s30, %s31
      %s50 = sadd.s32 %s44, %s40
      %s51 = ssub.s32 %s29, %s48
      %s52 = ssub.s32 %s49, %s50
      %s53 = sor.u32 %s51, %s52
      %p54 = scmp.eq.s32.totalorder %s53, 0
      %s56 = sadd.s32 %s55, 1
      %s57 = scalar_select %p54, %s55, %s56
      %p60 = pneg %p54
      %p61 = scmp.eq.s32.totalorder %s22, 1
      %p62 = por %p60, %p61
      %p63 = scmp.ne.s32.totalorder %s55, %s58
      %p64 = scmp.eq.s32.totalorder %s22, 0
      %p65 = por %p63, %p64
      %p66 = scmp.ne.s32.totalorder %s55, %s58
      %p67 = scmp.eq.s32.totalorder %s27, 1
      %p68 = por %p66, %p67
      %p69 = scmp.ne.s32.totalorder %s58, %s59
      %p70 = scmp.eq.s32.totalorder %s27, 0
      %p71 = por %p69, %p70
      %p72 = scmp.ne.s32.totalorder %s58, %s59
      %p73 = scmp.eq.s32.totalorder %s28, 1
      %p74 = por %p72, %p73
      %p76 = scmp.ne.s32.totalorder %s59, %s75
      %p77 = scmp.eq.s32.totalorder %s28, 0
      %p78 = por %p76, %p77
      %s79 = sadd.s32 %s30, %s31
      %s80 = sadd.s32 %s44, %s40
      %s81 = ssub.s32 %s29, %s48
      %s82 = ssub.s32 %s79, %s80
      %s83 = sor.u32 %s81, %s82
      %p84 = scmp.eq.s32.totalorder %s83, 0
      %s86 = sadd.s32 %s85, 1
      %s87 = scalar_select %p84, %s85, %s86
      %p90 = pneg %p84
      %p91 = scmp.eq.s32.totalorder %s22, 1
      %p92 = por %p90, %p91
      %p93 = scmp.ne.s32.totalorder %s85, %s88
      %p94 = scmp.eq.s32.totalorder %s22, 0
      %p95 = por %p93, %p94
      %p96 = scmp.ne.s32.totalorder %s85, %s88
      %p97 = scmp.eq.s32.totalorder %s27, 1
      %p98 = por %p96, %p97
      %p99 = scmp.ne.s32.totalorder %s88, %s89
      %p100 = scmp.eq.s32.totalorder %s27, 0
      %p101 = por %p99, %p100
      %p102 = scmp.ne.s32.totalorder %s88, %s89
      %p103 = scmp.eq.s32.totalorder %s28, 1
      %p104 = por %p102, %p103
      %p106 = scmp.ne.s32.totalorder %s89, %s105
      %p107 = scmp.eq.s32.totalorder %s28, 0
      %p108 = por %p106, %p107
      %s109 = ssub.s32 %s29, %s48
      %s110 = ssub.s32 %s30, %s44
      %s111 = sor.u32 %s109, %s110
      %p112 = scmp.eq.s32.totalorder %s111, 0
      %s114 = sadd.s32 %s113, 1
      %s115 = scalar_select %p112, %s113, %s114
      %p118 = pneg %p112
      %p119 = scmp.eq.s32.totalorder %s22, 1
      %p120 = por %p118, %p119
      %p121 = scmp.ne.s32.totalorder %s113, %s116
      %p122 = scmp.eq.s32.totalorder %s22, 0
      %p123 = por %p121, %p122
      %p124 = scmp.ne.s32.totalorder %s113, %s116
      %p125 = scmp.eq.s32.totalorder %s27, 1
      %p126 = por %p124, %p125
      %p127 = scmp.ne.s32.totalorder %s116, %s117
      %p128 = scmp.eq.s32.totalorder %s27, 0
      %p129 = por %p127, %p128
      %p130 = scmp.ne.s32.totalorder %s116, %s117
      %p131 = scmp.eq.s32.totalorder %s28, 1
      %p132 = por %p130, %p131
      %p134 = scmp.ne.s32.totalorder %s117, %s133
      %p135 = scmp.eq.s32.totalorder %s28, 0
      %p136 = por %p134, %p135
      %s137 = ssub.s32 %s29, %s48
      %s138 = ssub.s32 %s30, %s44
      %s139 = sor.u32 %s137, %s138
      %p140 = scmp.eq.s32.totalorder %s139, 0
      %s142 = sadd.s32 %s141, 1
      %s143 = scalar_select %p140, %s141, %s142
      %p146 = pneg %p140
      %p147 = scmp.eq.s32.totalorder %s22, 1
      %p148 = por %p146, %p147
      %p149 = scmp.ne.s32.totalorder %s141, %s144
      %p150 = scmp.eq.s32.totalorder %s22, 0
      %p151 = por %p149, %p150
      %p152 = scmp.ne.s32.totalorder %s141, %s144
      %p153 = scmp.eq.s32.totalorder %s27, 1
      %p154 = por %p152, %p153
      %p155 = scmp.ne.s32.totalorder %s144, %s145
      %p156 = scmp.eq.s32.totalorder %s27, 0
      %p157 = por %p155, %p156
      %p158 = scmp.ne.s32.totalorder %s144, %s145
      %p159 = scmp.eq.s32.totalorder %s28, 1
      %p160 = por %p158, %p159
      %p162 = scmp.ne.s32.totalorder %s145, %s161
      %p163 = scmp.eq.s32.totalorder %s28, 0
      %p164 = por %p162, %p163
      %p165 = scmp.le.s32.totalorder 1, %s22
      %p166 = scmp.lt.s32.totalorder %s22, 3
      %p167 = pnand %p165, %p166
      %p168 = pneg %p167
      // Predicated region
      $region9: #{tpu_custom_call.1} parent=5 // pred_check
        _
      $region10: #{tpu_custom_call.1} parent=5 // pred_check_branch
        %170 = sbr.rel (%p167) target = $region12
      $region11: #{tpu_custom_call.1} parent=5 // pred_region
        %s171 = ssub.s32 %s22, 1
      $region12: #{tpu_custom_call.1} parent=5 // pred_fallthru
        _
      %p172 = scmp.lt.s32.totalorder %s22, 2
      // Predicated region
      $region13: #{tpu_custom_call.1} parent=5 // pred_check
        %p173 = pneg %p172
      $region14: #{tpu_custom_call.1} parent=5 // pred_check_branch
        %175 = sbr.rel (%p173) target = $region16
      $region15: #{tpu_custom_call.1} parent=5 // pred_region
        // Predicated region
        $region17: #{tpu_custom_call.1} parent=15 // pred_check
          %p176 = pneg %p65
        $region18: #{tpu_custom_call.1} parent=15 // pred_check_branch
          %178 = sbr.rel (%p176) target = $region20
        $region19: #{tpu_custom_call.1} parent=15 // pred_region
          %s179 = sand.u32 %s55, 1
          %s180 = scalar_lea.sflag [#allocation3], %s179
          %s181 = sand.u32 %s55, 1
          %s182 = smul.addr %s181, 64
          %s183 = scalar_lea.vmem [#allocation2], %s182
          %s184 = sadd.s32 %s30, %s31
          %s185 = smul.u32 4, %s184
          %s187 = ssub.s32 1024, 1024
          %188 = vsyncadd %s180, %s187
          %s189 = smul.addr %s29, 16
          %s190 = sadd.s32 %s185, %s189
          %s191 = smul.addr %s190, 64
          %s192 = scalar_lea.hbm %s0, %s191
          %s193 = sshll.u32 %s183, 4
          %s194 = int_to_ptr.vmem [resolvable:$true] %s193
          %199 = dma.hbm_to_vmem [thread:$0]  %s192, 1024, %s194, %s180, 64, 64, 4
        $region20: #{tpu_custom_call.1} parent=15 // pred_fallthru
          _
        // Predicated region
        $region21: #{tpu_custom_call.1} parent=15 // pred_check
          %p200 = pneg %p95
        $region22: #{tpu_custom_call.1} parent=15 // pred_check_branch
          %202 = sbr.rel (%p200) target = $region24
        $region23: #{tpu_custom_call.1} parent=15 // pred_region
          %s203 = sand.u32 %s85, 1
          %s204 = scalar_lea.sflag [#allocation6], %s203
          %s205 = sand.u32 %s85, 1
          %s206 = smul.addr %s205, 8
          %s207 = scalar_lea.vmem [#allocation5], %s206
          %s208 = sadd.s32 %s30, %s31
          %s210 = ssub.s32 128, 128
          %211 = vsyncadd %s204, %s210
          %s212 = sadd.s32 %s208, %s29
          %s213 = smul.addr %s212, 128
          %s214 = scalar_lea.hbm %s1, %s213
          %s216 = sshll.u32 %s207, 4
          %s217 = int_to_ptr.vmem [resolvable:$true] %s216
          %219 = dma.hbm_to_vmem [thread:$0]  %s214, 128, %s217, %s204
        $region24: #{tpu_custom_call.1} parent=15 // pred_fallthru
          _
      $region16: #{tpu_custom_call.1} parent=5 // pred_fallthru
        _
      %p220 = scmp.le.s32.totalorder 1, %s22
      %p221 = scmp.lt.s32.totalorder %s22, 3
      %p222 = pnand %p220, %p221
      %p223 = pneg %p222
      // Predicated region
      $region25: #{tpu_custom_call.1} parent=5 // pred_check
        _
      $region26: #{tpu_custom_call.1} parent=5 // pred_check_branch
        %225 = sbr.rel (%p222) target = $region28
      $region27: #{tpu_custom_call.1} parent=5 // pred_region
        %s226 = ssub.s32 %s22, 1
        %s227 = sand.u32 %s58, 1
        %s228 = scalar_lea.sflag [#allocation3], %s227
        %s229 = sand.u32 %s58, 1
        %s230 = smul.addr %s229, 64
        %s231 = scalar_lea.vmem [#allocation2], %s230
        // Predicated region
        $region29: #{tpu_custom_call.1} parent=27 // pred_check
          %p232 = pneg %p71
        $region30: #{tpu_custom_call.1} parent=27 // pred_check_branch
          %234 = sbr.rel (%p232) target = $region32
        $region31: #{tpu_custom_call.1} parent=27 // pred_region
          %235 = dma.done %s228, 1024
        $region32: #{tpu_custom_call.1} parent=27 // pred_fallthru
          _
        %s236 = sand.u32 %s88, 1
        %s237 = scalar_lea.sflag [#allocation6], %s236
        %s238 = sand.u32 %s88, 1
        %s239 = smul.addr %s238, 8
        %s240 = scalar_lea.vmem [#allocation5], %s239
        // Predicated region
        $region33: #{tpu_custom_call.1} parent=27 // pred_check
          %p241 = pneg %p101
        $region34: #{tpu_custom_call.1} parent=27 // pred_check_branch
          %243 = sbr.rel (%p241) target = $region36
        $region35: #{tpu_custom_call.1} parent=27 // pred_region
          %244 = dma.done %s237, 128
        $region36: #{tpu_custom_call.1} parent=27 // pred_fallthru
          _
        %s245 = sand.u32 %s58, 1
        %s246 = scalar_lea.sflag [#allocation3], %s245
        %s247 = sand.u32 %s58, 1
        %s248 = smul.addr %s247, 64
        %s249 = scalar_lea.vmem [#allocation2], %s248
        %p250 = pneg %p71
        %p251 = pneg %p68
        %s252 = sand.u32 %s88, 1
        %s253 = scalar_lea.sflag [#allocation6], %s252
        %s254 = sand.u32 %s88, 1
        %s255 = smul.addr %s254, 8
        %s256 = scalar_lea.vmem [#allocation5], %s255
        %p257 = pneg %p101
        %p258 = pneg %p98
        %p259 = pneg %p129
        %p260 = pneg %p126
        %s261 = sand.u32 %s116, 1
        %s262 = scalar_lea.sflag [#allocation4], %s261
        %s263 = sand.u32 %s116, 1
        %s264 = smul.addr %s263, 32
        %s265 = scalar_lea.vmem [#allocation7], %s264
        %p266 = pneg %p157
        %p267 = pneg %p154
        %s268 = sand.u32 %s144, 1
        %s269 = scalar_lea.sflag [#allocation9], %s268
        %s270 = sand.u32 %s144, 1
        %s271 = smul.addr %s270, 32
        %s272 = scalar_lea.vmem [#allocation8], %s271
        %s273 = sadd.s32 %s33, %s34
        %s274 = smul.u32 4, %s273
        %s275 = sadd.s32 %s33, %s34
        %p276 = scmp.eq.s32.totalorder %s34, 0
        // Predicated region
        $region37: #{tpu_custom_call.1} parent=27 // pred_check
          %p277 = pneg %p276
        $region38: #{tpu_custom_call.1} parent=27 // pred_check_branch
          %279 = sbr.rel (%p277) target = $region40
        $region39: #{tpu_custom_call.1} parent=27 // pred_region
          %280 = vst [vmem:[%s265] sm:$0xff] 0.0
          %281 = vst [vmem:[%s265 + $0x8] sm:$0xff] 0.0
          %282 = vst [vmem:[%s265 + $0x10] sm:$0xff] 0.0
          %283 = vst [vmem:[%s265 + $0x18] sm:$0xff] 0.0
          %284 = vst [vmem:[%s272] sm:$0xff] 0.0
          %285 = vst [vmem:[%s272 + $0x8] sm:$0xff] 0.0
          %286 = vst [vmem:[%s272 + $0x10] sm:$0xff] 0.0
          %287 = vst [vmem:[%s272 + $0x18] sm:$0xff] 0.0
        $region40: #{tpu_custom_call.1} parent=27 // pred_fallthru
          _
        %v288 = vld [vmem:[%s231] sm:$0xf]
        %v289 = vld [vmem:[%s231 + $0x4] sm:$0xf]
        %v290 = vld [vmem:[%s231 + $0x8] sm:$0xf]
        %v291 = vld [vmem:[%s231 + $0xc] sm:$0xf]
        %v292 = vunpack.c.l.bf16 %v288
        %v293 = vunpack.c.l.bf16 %v289
        %v294 = vunpack.c.l.bf16 %v290
        %v295 = vunpack.c.l.bf16 %v291
        %s296 = scalar_lea.vmem %s231, 16 [#allocation2]
        %v297 = vld [vmem:[%s296] sm:$0xf]
        %v298 = vld [vmem:[%s296 + $0x4] sm:$0xf]
        %v299 = vld [vmem:[%s296 + $0x8] sm:$0xf]
        %v300 = vld [vmem:[%s296 + $0xc] sm:$0xf]
        %v301 = vunpack.c.l.bf16 %v297
        %v302 = vunpack.c.l.bf16 %v298
        %v303 = vunpack.c.l.bf16 %v299
        %v304 = vunpack.c.l.bf16 %v300
        %v305 = vmax.f32 %v292, %v301
        %v306 = vmax.f32 %v293, %v302
        %v307 = vmax.f32 %v294, %v303
        %v308 = vmax.f32 %v295, %v304
        %s309 = scalar_lea.vmem %s231, 32 [#allocation2]
        %v310 = vld [vmem:[%s309] sm:$0xf]
        %v311 = vld [vmem:[%s309 + $0x4] sm:$0xf]
        %v312 = vld [vmem:[%s309 + $0x8] sm:$0xf]
        %v313 = vld [vmem:[%s309 + $0xc] sm:$0xf]
        %v314 = vunpack.c.l.bf16 %v310
        %v315 = vunpack.c.l.bf16 %v311
        %v316 = vunpack.c.l.bf16 %v312
        %v317 = vunpack.c.l.bf16 %v313
        %v318 = vmax.f32 %v305, %v314
        %v319 = vmax.f32 %v306, %v315
        %v320 = vmax.f32 %v307, %v316
        %v321 = vmax.f32 %v308, %v317
        %s322 = scalar_lea.vmem %s231, 48 [#allocation2]
        %v323 = vld [vmem:[%s322] sm:$0xf]
        %v324 = vld [vmem:[%s322 + $0x4] sm:$0xf]
        %v325 = vld [vmem:[%s322 + $0x8] sm:$0xf]
        %v326 = vld [vmem:[%s322 + $0xc] sm:$0xf]
        %v327 = vunpack.c.l.bf16 %v323
        %v328 = vunpack.c.l.bf16 %v324
        %v329 = vunpack.c.l.bf16 %v325
        %v330 = vunpack.c.l.bf16 %v326
        %v331 = vmax.f32 %v318, %v327
        %v332 = vmax.f32 %v319, %v328
        %v333 = vmax.f32 %v320, %v329
        %v334 = vmax.f32 %v321, %v330
        %v335 = vsub.f32 %v292, %v331
        %v336 = vsub.f32 %v293, %v332
        %v337 = vsub.f32 %v294, %v333
        %v338 = vsub.f32 %v295, %v334
        %v339 = vmul.f32 %v335, 1.442695
        %v340 = vpow.pop %v339
        %v341 = vmul.f32 %v336, 1.442695
        %v342 = vpow.pop %v341
        %v343 = vmul.f32 %v337, 1.442695
        %v344 = vpow.pop %v343
        %v345 = vmul.f32 %v338, 1.442695
        %v346 = vpow.pop %v345
        %v347 = vsub.f32 %v301, %v331
        %v348 = vsub.f32 %v302, %v332
        %v349 = vsub.f32 %v303, %v333
        %v350 = vsub.f32 %v304, %v334
        %v351 = vmul.f32 %v347, 1.442695
        %v352 = vpow.pop %v351
        %v353 = vmul.f32 %v348, 1.442695
        %v354 = vpow.pop %v353
        %v355 = vmul.f32 %v349, 1.442695
        %v356 = vpow.pop %v355
        %v357 = vmul.f32 %v350, 1.442695
        %v358 = vpow.pop %v357
        %v359 = vadd.f32 %v340, %v352
        %v360 = vadd.f32 %v342, %v354
        %v361 = vadd.f32 %v344, %v356
        %v362 = vadd.f32 %v346, %v358
        %v363 = vsub.f32 %v314, %v331
        %v364 = vsub.f32 %v315, %v332
        %v365 = vsub.f32 %v316, %v333
        %v366 = vsub.f32 %v317, %v334
        %v367 = vmul.f32 %v363, 1.442695
        %v368 = vpow.pop %v367
        %v369 = vmul.f32 %v364, 1.442695
        %v370 = vpow.pop %v369
        %v371 = vmul.f32 %v365, 1.442695
        %v372 = vpow.pop %v371
        %v373 = vmul.f32 %v366, 1.442695
        %v374 = vpow.pop %v373
        %v375 = vadd.f32 %v359, %v368
        %v376 = vadd.f32 %v360, %v370
        %v377 = vadd.f32 %v361, %v372
        %v378 = vadd.f32 %v362, %v374
        %v379 = vsub.f32 %v327, %v331
        %v380 = vsub.f32 %v328, %v332
        %v381 = vsub.f32 %v329, %v333
        %v382 = vsub.f32 %v330, %v334
        %v383 = vmul.f32 %v379, 1.442695
        %v384 = vpow.pop %v383
        %v385 = vmul.f32 %v380, 1.442695
        %v386 = vpow.pop %v385
        %v387 = vmul.f32 %v381, 1.442695
        %v388 = vpow.pop %v387
        %v389 = vmul.f32 %v382, 1.442695
        %v390 = vpow.pop %v389
        %v391 = vadd.f32 %v375, %v384
        %v392 = vadd.f32 %v376, %v386
        %v393 = vadd.f32 %v377, %v388
        %v394 = vadd.f32 %v378, %v390
        %v395 = vrcp.pop %v391
        %v396 = vrcp.pop %v392
        %v397 = vrcp.pop %v393
        %v398 = vrcp.pop %v394
        %v399 = vlaneseq
        %v400 = vshrl.u32 %v399, 7
        %v401 = vadd.s32 %v400, 8
        %v402 = vadd.s32 %v400, 16
        %v403 = vadd.s32 %v400, 24
        %v404 = vlaneseq
        %v405 = vand.u32 %v404, 127
        %s406 = sadd.s32 %s33, %s34
        %s407 = smul.u32 %s406, 32
        %v408 = vstv %s407
        %v409 = vadd.s32 %v408, %v400
        %v410 = vadd.s32 %v408, %v401
        %v411 = vadd.s32 %v408, %v402
        %v412 = vadd.s32 %v408, %v403
        %v413 = vmul.u32 %v409, 128
        %v414 = vmul.u32 %v410, 128
        %v415 = vmul.u32 %v411, 128
        %v416 = vmul.u32 %v412, 128
        %v417 = vadd.s32 %v413, %v405
        %v418 = vadd.s32 %v414, %v405
        %v419 = vadd.s32 %v415, %v405
        %v420 = vadd.s32 %v416, %v405
        %vm421 = vcmp.lt.s32.totalorder %v417, 256
        %vm422 = vcmp.lt.s32.totalorder %v418, 256
        %vm423 = vcmp.lt.s32.totalorder %v419, 256
        %vm424 = vcmp.lt.s32.totalorder %v420, 256
        %v425 = vsel %vm421, %v395, 0.0
        %v426 = vsel %vm422, %v396, 0.0
        %v427 = vsel %vm423, %v397, 0.0
        %v428 = vsel %vm424, %v398, 0.0
        %v429 = vld [vmem:[%s240] sm:$0xff]
        %v430 = vunpack.c.0.s8 %v429
        %v431 = vunpack.c.1.s8 %v429
        %v432 = vunpack.c.2.s8 %v429
        %v433 = vunpack.c.3.s8 %v429
        %v434 = vmul.f32 %v340, %v425
        %v435 = vmul.f32 %v342, %v426
        %v436 = vmul.f32 %v344, %v427
        %v437 = vmul.f32 %v346, %v428
        %vm438 = vcmp.eq.s32.totalorder %v430, 0
        %vm439 = vcmp.eq.s32.totalorder %v431, 0
        %vm440 = vcmp.eq.s32.totalorder %v432, 0
        %vm441 = vcmp.eq.s32.totalorder %v433, 0
        %v442 = vsel %vm438, %v434, 0.0
        %v443 = vsel %vm439, %v435, 0.0
        %v444 = vsel %vm440, %v436, 0.0
        %v445 = vsel %vm441, %v437, 0.0
        %v446 = vadd.f32 %v434, 1.0
        %v447 = vadd.f32 %v435, 1.0
        %v448 = vadd.f32 %v436, 1.0
        %v449 = vadd.f32 %v437, 1.0
        %v450 = vsel %vm438, %v446, %v434
        %v451 = vsel %vm439, %v447, %v435
        %v452 = vsel %vm440, %v448, %v436
        %v453 = vsel %vm441, %v449, %v437
        %v454 = vld [vmem:[%s265] sm:$0xff]
        %v455 = vadd.f32 %v442, %v443
        %v456 = vadd.f32 %v455, %v444
        %v457 = vadd.f32 %v456, %v445
        %v458 = vadd.f32 %v454, %v457
        %459 = vst [vmem:[%s265] sm:$0xff] %v458
        %v460 = vld [vmem:[%s272] sm:$0xff]
        %v461 = vadd.f32 %v450, %v451
        %v462 = vadd.f32 %v461, %v452
        %v463 = vadd.f32 %v462, %v453
        %v464 = vadd.f32 %v460, %v463
        %465 = vst [vmem:[%s272] sm:$0xff] %v464
        %v466 = vmul.f32 %v352, %v425
        %v467 = vmul.f32 %v354, %v426
        %v468 = vmul.f32 %v356, %v427
        %v469 = vmul.f32 %v358, %v428
        %vm470 = vcmp.eq.s32.totalorder %v430, 1
        %vm471 = vcmp.eq.s32.totalorder %v431, 1
        %vm472 = vcmp.eq.s32.totalorder %v432, 1
        %vm473 = vcmp.eq.s32.totalorder %v433, 1
        %v474 = vsel %vm470, %v466, 0.0
        %v475 = vsel %vm471, %v467, 0.0
        %v476 = vsel %vm472, %v468, 0.0
        %v477 = vsel %vm473, %v469, 0.0
        %v478 = vadd.f32 %v466, 1.0
        %v479 = vadd.f32 %v467, 1.0
        %v480 = vadd.f32 %v468, 1.0
        %v481 = vadd.f32 %v469, 1.0
        %v482 = vsel %vm470, %v478, %v466
        %v483 = vsel %vm471, %v479, %v467
        %v484 = vsel %vm472, %v480, %v468
        %v485 = vsel %vm473, %v481, %v469
        %s486 = scalar_lea.vmem %s265, 8 [#allocation7]
        %v487 = vld [vmem:[%s486] sm:$0xff]
        %v488 = vadd.f32 %v474, %v475
        %v489 = vadd.f32 %v488, %v476
        %v490 = vadd.f32 %v489, %v477
        %v491 = vadd.f32 %v487, %v490
        %492 = vst [vmem:[%s486] sm:$0xff] %v491
        %s493 = scalar_lea.vmem %s272, 8 [#allocation8]
        %v494 = vld [vmem:[%s493] sm:$0xff]
        %v495 = vadd.f32 %v482, %v483
        %v496 = vadd.f32 %v495, %v484
        %v497 = vadd.f32 %v496, %v485
        %v498 = vadd.f32 %v494, %v497
        %499 = vst [vmem:[%s493] sm:$0xff] %v498
        %v500 = vmul.f32 %v368, %v425
        %v501 = vmul.f32 %v370, %v426
        %v502 = vmul.f32 %v372, %v427
        %v503 = vmul.f32 %v374, %v428
        %vm504 = vcmp.eq.s32.totalorder %v430, 2
        %vm505 = vcmp.eq.s32.totalorder %v431, 2
        %vm506 = vcmp.eq.s32.totalorder %v432, 2
        %vm507 = vcmp.eq.s32.totalorder %v433, 2
        %v508 = vsel %vm504, %v500, 0.0
        %v509 = vsel %vm505, %v501, 0.0
        %v510 = vsel %vm506, %v502, 0.0
        %v511 = vsel %vm507, %v503, 0.0
        %v512 = vadd.f32 %v500, 1.0
        %v513 = vadd.f32 %v501, 1.0
        %v514 = vadd.f32 %v502, 1.0
        %v515 = vadd.f32 %v503, 1.0
        %v516 = vsel %vm504, %v512, %v500
        %v517 = vsel %vm505, %v513, %v501
        %v518 = vsel %vm506, %v514, %v502
        %v519 = vsel %vm507, %v515, %v503
        %s520 = scalar_lea.vmem %s265, 16 [#allocation7]
        %v521 = vld [vmem:[%s520] sm:$0xff]
        %v522 = vadd.f32 %v508, %v509
        %v523 = vadd.f32 %v522, %v510
        %v524 = vadd.f32 %v523, %v511
        %v525 = vadd.f32 %v521, %v524
        %526 = vst [vmem:[%s520] sm:$0xff] %v525
        %s527 = scalar_lea.vmem %s272, 16 [#allocation8]
        %v528 = vld [vmem:[%s527] sm:$0xff]
        %v529 = vadd.f32 %v516, %v517
        %v530 = vadd.f32 %v529, %v518
        %v531 = vadd.f32 %v530, %v519
        %v532 = vadd.f32 %v528, %v531
        %533 = vst [vmem:[%s527] sm:$0xff] %v532
        %v534 = vmul.f32 %v384, %v425
        %v535 = vmul.f32 %v386, %v426
        %v536 = vmul.f32 %v388, %v427
        %v537 = vmul.f32 %v390, %v428
        %vm538 = vcmp.eq.s32.totalorder %v430, 3
        %vm539 = vcmp.eq.s32.totalorder %v431, 3
        %vm540 = vcmp.eq.s32.totalorder %v432, 3
        %vm541 = vcmp.eq.s32.totalorder %v433, 3
        %v542 = vsel %vm538, %v534, 0.0
        %v543 = vsel %vm539, %v535, 0.0
        %v544 = vsel %vm540, %v536, 0.0
        %v545 = vsel %vm541, %v537, 0.0
        %v546 = vadd.f32 %v534, 1.0
        %v547 = vadd.f32 %v535, 1.0
        %v548 = vadd.f32 %v536, 1.0
        %v549 = vadd.f32 %v537, 1.0
        %v550 = vsel %vm538, %v546, %v534
        %v551 = vsel %vm539, %v547, %v535
        %v552 = vsel %vm540, %v548, %v536
        %v553 = vsel %vm541, %v549, %v537
        %s554 = scalar_lea.vmem %s265, 24 [#allocation7]
        %v555 = vld [vmem:[%s554] sm:$0xff]
        %v556 = vadd.f32 %v542, %v543
        %v557 = vadd.f32 %v556, %v544
        %v558 = vadd.f32 %v557, %v545
        %v559 = vadd.f32 %v555, %v558
        %560 = vst [vmem:[%s554] sm:$0xff] %v559
        %s561 = scalar_lea.vmem %s272, 24 [#allocation8]
        %v562 = vld [vmem:[%s561] sm:$0xff]
        %v563 = vadd.f32 %v550, %v551
        %v564 = vadd.f32 %v563, %v552
        %v565 = vadd.f32 %v564, %v553
        %v566 = vadd.f32 %v562, %v565
        %567 = vst [vmem:[%s561] sm:$0xff] %v566
        %s568 = sand.u32 %s116, 1
        %s569 = scalar_lea.sflag [#allocation4], %s568
        %s570 = sand.u32 %s116, 1
        %s571 = smul.addr %s570, 32
        %s572 = scalar_lea.vmem [#allocation7], %s571
        %s573 = sand.u32 %s144, 1
        %s574 = scalar_lea.sflag [#allocation9], %s573
        %s575 = sand.u32 %s144, 1
        %s576 = smul.addr %s575, 32
        %s577 = scalar_lea.vmem [#allocation8], %s576
        // Predicated region
        $region41: #{tpu_custom_call.1} parent=27 // pred_check
          %p578 = pneg %p126
        $region42: #{tpu_custom_call.1} parent=27 // pred_check_branch
          %580 = sbr.rel (%p578) target = $region44
        $region43: #{tpu_custom_call.1} parent=27 // pred_region
          %s582 = ssub.s32 512, 512
          %583 = vsyncadd %s569, %s582
          %s584 = smul.addr %s33, 4
          %s585 = smul.addr %s32, 4
          %s586 = sadd.s32 %s584, %s585
          %s587 = smul.addr %s586, 128
          %s588 = scalar_lea.hbm %s2, %s587
          %s589 = sshll.u32 %s572, 4
          %s590 = int_to_ptr.vmem [resolvable:$true] %s589
          %595 = dma.vmem_to_hbm [thread:$0]  %s590, 512, %s588, %s569, 128, 128, 8
        $region44: #{tpu_custom_call.1} parent=27 // pred_fallthru
          _
        // Predicated region
        $region45: #{tpu_custom_call.1} parent=27 // pred_check
          %p596 = pneg %p154
        $region46: #{tpu_custom_call.1} parent=27 // pred_check_branch
          %598 = sbr.rel (%p596) target = $region48
        $region47: #{tpu_custom_call.1} parent=27 // pred_region
          %s600 = ssub.s32 512, 512
          %601 = vsyncadd %s574, %s600
          %s602 = smul.addr %s33, 4
          %s603 = smul.addr %s32, 4
          %s604 = sadd.s32 %s602, %s603
          %s605 = smul.addr %s604, 128
          %s606 = scalar_lea.hbm %s3, %s605
          %s607 = sshll.u32 %s577, 4
          %s608 = int_to_ptr.vmem [resolvable:$true] %s607
          %613 = dma.vmem_to_hbm [thread:$0]  %s608, 512, %s606, %s574, 128, 128, 8
        $region48: #{tpu_custom_call.1} parent=27 // pred_fallthru
          _
      $region28: #{tpu_custom_call.1} parent=5 // pred_fallthru
        _
      %p614 = scmp.le.s32.totalorder 2, %s22
      // Predicated region
      $region49: #{tpu_custom_call.1} parent=5 // pred_check
        %p615 = pneg %p614
      $region50: #{tpu_custom_call.1} parent=5 // pred_check_branch
        %617 = sbr.rel (%p615) target = $region52
      $region51: #{tpu_custom_call.1} parent=5 // pred_region
        %s618 = ssub.s32 %s22, 2
        // Predicated region
        $region53: #{tpu_custom_call.1} parent=51 // pred_check
          %p619 = pneg %p132
        $region54: #{tpu_custom_call.1} parent=51 // pred_check_branch
          %621 = sbr.rel (%p619) target = $region56
        $region55: #{tpu_custom_call.1} parent=51 // pred_region
          %s622 = sand.u32 %s117, 1
          %s623 = scalar_lea.sflag [#allocation4], %s622
          %s624 = sand.u32 %s117, 1
          %s625 = smul.addr %s624, 32
          %s626 = scalar_lea.vmem [#allocation7], %s625
          %627 = dma.done %s623, 512
        $region56: #{tpu_custom_call.1} parent=51 // pred_fallthru
          _
        // Predicated region
        $region57: #{tpu_custom_call.1} parent=51 // pred_check
          %p628 = pneg %p160
        $region58: #{tpu_custom_call.1} parent=51 // pred_check_branch
          %630 = sbr.rel (%p628) target = $region60
        $region59: #{tpu_custom_call.1} parent=51 // pred_region
          %s631 = sand.u32 %s145, 1
          %s632 = scalar_lea.sflag [#allocation9], %s631
          %s633 = sand.u32 %s145, 1
          %s634 = smul.addr %s633, 32
          %s635 = scalar_lea.vmem [#allocation8], %s634
          %636 = dma.done %s632, 512
        $region60: #{tpu_custom_call.1} parent=51 // pred_fallthru
          _
      $region52: #{tpu_custom_call.1} parent=5 // pred_fallthru
        _
    $region6: #{tpu_custom_call.1} parent=1 // loop_footer
      %s26 = sadd.s32 1, %s22
    $region7: #{tpu_custom_call.1} parent=1 // loop_footer_branch
      %21 = sbr.rel target = $region3
    $region8: #{tpu_custom_call.1} parent=1 // loop_exit
      _
    %637 = vsyncpa [#allocation3], 1
    %s638 = scalar_lea.sflag [#allocation3], 1
    %639 = vsyncpa %s638, 1
    %640 = vsyncpa [#allocation6], 1
    %s641 = scalar_lea.sflag [#allocation6], 1
    %642 = vsyncpa %s641, 1
    %643 = vsyncpa [#allocation4], 1
    %s644 = scalar_lea.sflag [#allocation4], 1
    %645 = vsyncpa %s644, 1
    %646 = vsyncpa [#allocation9], 1
    %s647 = scalar_lea.sflag [#allocation9], 1
    %648 = vsyncpa %s647, 1

</llo_original>
